<compile_context>
chip_gen: v5e
topology: v5e:2x2
jax: 0.10.0
libtpu: 0.0.40
codegen_flags: <defaults>
</compile_context>

<pallas_src>
import jax
import jax.numpy as jnp
from jax.experimental import pallas as pl
from jax.experimental.pallas import tpu as pltpu

_LANES = 128
_SUBLANES = 8
_SINGLE_BLOCK_BYTES = 256 << 10   # below this: one whole-slab block (no pipeline)
_TINY_ELEMS = 1024                # below this: plain jnp.log beats a custom call


def _log_kernel(x_ref, o_ref):
    # HBM traffic stays in the native dtype; the transcendental runs in f32
    # in-register (no-op casts for f32; keeps bf16 correct on v5e's EUP).
    x = x_ref[...]
    o_ref[...] = jnp.log(x.astype(jnp.float32)).astype(o_ref.dtype)


def _chip_tile_config():
    """Return (tile_bytes, vmem_limit_bytes_or_None) for the local TPU."""
    kind = ""
    try:
        kind = jax.devices()[0].device_kind.lower()
    except Exception:
        pass
    if any(v in kind for v in ("v2", "v3", "v4", "v5")):
        # Conservative: v5e's default scoped VMEM is 16 MiB; 2 MiB tiles keep
        # 2 in-bufs + 2 out-bufs at 8 MiB with no limit override needed.
        return 2 << 20, None
    # v6e / v7x / unknown-new: 4 MiB tiles -> 16 MiB of double-buffered
    # in+out; set the scoped-VMEM limit explicitly with headroom
    # (physical VMEM: 128 MiB v6e, 64 MiB per-TC v7x).
    return 4 << 20, 40 << 20


def _run_log_2d(slab: jax.Array, tile_bytes: int, vmem_limit_bytes) -> jax.Array:
    """Run the elementwise-log kernel over a lane-dense (rows, 128) slab."""
    rows, lanes = slab.shape
    dtype = slab.dtype
    itemsize = dtype.itemsize
    slab_bytes = rows * lanes * itemsize

    # Sublane packing of the second-minor dim: 8 rows/vreg for 32-bit,
    # 16 for 16-bit dtypes.
    pack = _SUBLANES * max(1, 4 // itemsize)

    if slab_bytes <= _SINGLE_BLOCK_BYTES:
        # Small slab: single full-extent block, skip pipeline setup.
        grid = (1,)
        block_rows = rows
    else:
        # Constant-byte tile across dtypes, rows a multiple of the packing.
        tile_rows = max(pack, (tile_bytes // (lanes * itemsize)) // pack * pack)
        # Guarantee >= ~4 grid steps so DMA-in / EUP log / DMA-out overlap
        # (a single block would fully serialize them).
        if rows < 4 * tile_rows:
            tile_rows = max(pack, (rows // 4) // pack * pack)
        grid = (pl.cdiv(rows, tile_rows),)
        block_rows = tile_rows

    n = rows * lanes
    cost = pl.CostEstimate(
        flops=0,
        transcendentals=n,
        bytes_accessed=2 * n * itemsize,
    )

    return pl.pallas_call(
        _log_kernel,
        out_shape=jax.ShapeDtypeStruct((rows, lanes), dtype),
        grid_spec=pltpu.PrefetchScalarGridSpec(
            num_scalar_prefetch=0,
            grid=grid,
            in_specs=[pl.BlockSpec((block_rows, lanes), lambda i: (i, 0))],
            out_specs=pl.BlockSpec((block_rows, lanes), lambda i: (i, 0)),
        ),
        compiler_params=pltpu.CompilerParams(
            # Grid axis is fully independent -> shardable across TensorCores.
            dimension_semantics=("parallel",),
            vmem_limit_bytes=vmem_limit_bytes,
        ),
        cost_estimate=cost,
    )(slab)


def pallas_log(x: jax.Array) -> jax.Array:
    """Elementwise natural log via a Pallas TPU kernel. Matches torch.log(X)."""
    orig_shape = x.shape

    # torch.log promotes integer/bool inputs to a float dtype; f64 has no TPU path.
    if not jnp.issubdtype(x.dtype, jnp.floating):
        x = x.astype(jnp.float32)
    elif x.dtype.itemsize > 4:
        x = x.astype(jnp.float32)
    dtype = x.dtype
    n = x.size

    if n == 0:
        return jnp.zeros(orig_shape, dtype)

    # Tiny inputs: custom-call launch + pipeline setup dominates; XLA's fused
    # elementwise log is strictly cheaper.
    if n < _TINY_ELEMS:
        return jnp.log(x)

    tile_bytes, vmem_limit = _chip_tile_config()

    if n % _LANES == 0:
        # Aligned fast path: flat reshape to (rows, 128) is metadata-only.
        rows = n // _LANES
        out = _run_log_2d(x.reshape(rows, _LANES), tile_bytes, vmem_limit)
        return out.reshape(orig_shape)

    # Ragged path: kernel over the 128-aligned prefix, plain jnp.log on the
    # <128-element tail (no full-array pad + slice round trips through HBM).
    flat = x.reshape(-1)
    n_main = (n // _LANES) * _LANES
    main = _run_log_2d(
        flat[:n_main].reshape(n_main // _LANES, _LANES), tile_bytes, vmem_limit
    ).reshape(-1)
    tail = jnp.log(flat[n_main:])
    return jnp.concatenate([main, tail]).reshape(orig_shape)


if __name__ == "__main__":
    key = jax.random.PRNGKey(0)
    k0, k1, k2, k3 = jax.random.split(key, 4)

    # 1) NCHW f32 (2,4,16,16) = 2048 elems -> aligned path, single-block kernel.
    x = jax.random.uniform(k0, (2, 4, 16, 16), dtype=jnp.float32,
                           minval=0.1, maxval=5.0)
    y = jax.block_until_ready(pallas_log(x))
    assert y.shape == x.shape and y.dtype == x.dtype
    assert jnp.allclose(y, jnp.log(x), atol=1e-6, rtol=1e-6)

    # 2) Larger f32 slab (1 MiB) -> multi-step pipelined grid (>= 4 steps).
    xl = jax.random.uniform(k1, (8, 4, 64, 128), dtype=jnp.float32,
                            minval=0.1, maxval=5.0)
    yl = jax.block_until_ready(pallas_log(xl))
    assert yl.shape == xl.shape and yl.dtype == xl.dtype
    assert jnp.allclose(yl, jnp.log(xl), atol=1e-6, rtol=1e-6)

    # 3) bf16 input -> bf16 on the wire, f32 log in-register, bf16 out.
    xb = jax.random.uniform(k2, (2, 4, 16, 32), dtype=jnp.float32,
                            minval=0.1, maxval=5.0).astype(jnp.bfloat16)
    yb = jax.block_until_ready(pallas_log(xb))
    assert yb.shape == xb.shape and yb.dtype == jnp.bfloat16
    assert jnp.allclose(yb.astype(jnp.float32),
                        jnp.log(xb.astype(jnp.float32)), atol=2e-2, rtol=2e-2)

    # 4) Ragged size (5000 elems, not a multiple of 128) -> prefix kernel + tail.
    xr = jax.random.uniform(k3, (5, 1000), dtype=jnp.float32,
                            minval=0.1, maxval=5.0)
    yr = jax.block_until_ready(pallas_log(xr))
    assert yr.shape == xr.shape and yr.dtype == xr.dtype
    assert jnp.allclose(yr, jnp.log(xr), atol=1e-6, rtol=1e-6)

    # 5) Integer input promotes to float32 (torch.log semantics).
    xi = (jnp.arange(2048, dtype=jnp.int32) + 1).reshape(2, 4, 16, 16)
    yi = jax.block_until_ready(pallas_log(xi))
    assert yi.dtype == jnp.float32
    assert jnp.allclose(yi, jnp.log(xi.astype(jnp.float32)), atol=1e-6, rtol=1e-6)

    # 6) Tiny input -> wrapper fast path (no pallas_call).
    xt = jax.random.uniform(k0, (3, 7, 11), dtype=jnp.float32,
                            minval=0.1, maxval=5.0)
    yt = jax.block_until_ready(pallas_log(xt))
    assert jnp.allclose(yt, jnp.log(xt), atol=1e-6, rtol=1e-6)

    print("KERNEL_OK")
</pallas_src>

<mosaic_0001>
module attributes {stable_mosaic.version = 11 : i64} {
  func.func @_log_kernel(%arg0: i32, %arg1: memref<16x128xf32, #tpu.memory_space<vmem>>, %arg2: memref<16x128xf32, #tpu.memory_space<vmem>>) attributes {dimension_semantics = [#tpu.dimension_semantics<parallel>], iteration_bounds = array<i64: 1>, scalar_prefetch = 0 : i64, scratch_operands = 0 : i64, tpu.core_type = #tpu.core_type<tc>, window_params = [{transform_indices = @transform_0, window_bounds = array<i64: 16, 128>}, {transform_indices = @transform_1, window_bounds = array<i64: 16, 128>}]} {
    %c0 = arith.constant 0 : index
    %c0_0 = arith.constant 0 : index
    %0 = vector.load %arg1[%c0, %c0_0] : memref<16x128xf32, #tpu.memory_space<vmem>>, vector<16x128xf32>
    %1 = math.log %0 : vector<16x128xf32>
    %c0_1 = arith.constant 0 : index
    %c0_2 = arith.constant 0 : index
    %2 = vector.load %arg2[%c0_1, %c0_2] : memref<16x128xf32, #tpu.memory_space<vmem>>, vector<16x128xf32>
    tpu.vector_store %arg2[%c0_1, %c0_2], %1 {strides = array<i32>} : memref<16x128xf32, #tpu.memory_space<vmem>>, vector<16x128xf32>,
    return
  }
  func.func @transform_0(%arg0: i32) -> (i32, i32) {
    %c0_i32 = arith.constant 0 : i32
    %c0_i32_0 = arith.constant 0 : i32
    return %arg0, %c0_i32 : i32, i32
  }
  func.func @transform_1(%arg0: i32) -> (i32, i32) {
    %c0_i32 = arith.constant 0 : i32
    %c0_i32_0 = arith.constant 0 : i32
    return %arg0, %c0_i32 : i32, i32
  }
}

</mosaic_0001>

<llo_original>
// kernel: tpu_custom_call.1
$region0: #{tpu_custom_call.1}
  #allocation0 [shape = 'u32[]', space=smem, size = 0x4, offset = 0x4, fixed_abs, tag = 'smem constant byte address 0x4 - core index']
  #allocation1 [shape = 'u32[72,128]{1,0:T(1,128)}', space=vmem, size = 0x9000, scoped, tag = 'internal scratch']
  %s0 = inlined_call_operand.hbm [shape: f32[16,128], index: 0, kind: input, shape index: {}]
  %s1 = inlined_call_operand.hbm [shape: f32[16,128], index: 1, kind: output, shape index: {}]
  %s2 = sld [smem:[#allocation0]]
  $region18: #{tpu_custom_call.1} parent=0
    _
  %s4 = ssub.s32 1, %s2
  %s5 = scalar_select 0, %s4, %s2
  $region1: #{tpu_custom_call.1} parent=0
    #allocation2 [shape = 'u8[8192]{0}', space=vmem, size = 0x2000, scoped, tag = 'input window, operand 0, single buffered']
    #allocation3 [shape = 's32[1]{0}', space=sflag, size = 0x4, scoped, tag = 'scoped memory for tpu_custom_call.1']
    #allocation4 [shape = 's32[1]{0}', space=sflag, size = 0x4, scoped, tag = 'scoped memory for tpu_custom_call.1']
    #allocation5 [shape = 'u8[8192]{0}', space=vmem, size = 0x2000, scoped, tag = 'output window, operand 0, single buffered']
    %6 = vsyncpa [#allocation3], 0
    %7 = vsyncpa [#allocation4], 0
    // Predicated region
    $region2: #{tpu_custom_call.1} parent=1 // pred_check
      _
    $region3: #{tpu_custom_call.1} parent=1 // pred_check_branch
      %9 = sbr.rel (0) target = $region5
    $region4: #{tpu_custom_call.1} parent=1 // pred_region
      %11 = vsyncadd [#allocation3], 0
      %s12 = sshll.u32 %s0, 4
      %s13 = int_to_ptr.hbm [resolvable:$true] %s12
      %s14 = sshll.u32 [#allocation2], 4
      %s15 = int_to_ptr.vmem [resolvable:$true] %s14
      %20 = dma.hbm_to_vmem [thread:$0]  %s13, 256, %s15, [#allocation3], 128, 128, 8
    $region5: #{tpu_custom_call.1} parent=1 // pred_fallthru
      _
    // Predicated region
    $region6: #{tpu_custom_call.1} parent=1 // pred_check
      _
    $region7: #{tpu_custom_call.1} parent=1 // pred_check_branch
      %22 = sbr.rel (0) target = $region9
    $region8: #{tpu_custom_call.1} parent=1 // pred_region
      %24 = dma.done [#allocation3], 256
    $region9: #{tpu_custom_call.1} parent=1 // pred_fallthru
      _
    %v25 = vld [vmem:[#allocation2] sm:$0xff]
    %v26 = vld [vmem:[#allocation2 + $0x8] sm:$0xff]
    %v27 = vlog2.pop %v25
    %v28 = vmul.f32 %v27, 0.6931472
    %v29 = vlog2.pop %v26
    %v30 = vmul.f32 %v29, 0.6931472
    %31 = vst [vmem:[#allocation5] sm:$0xff] %v28
    %32 = vst [vmem:[#allocation5 + $0x8] sm:$0xff] %v30
    // Predicated region
    $region10: #{tpu_custom_call.1} parent=1 // pred_check
      _
    $region11: #{tpu_custom_call.1} parent=1 // pred_check_branch
      %34 = sbr.rel (0) target = $region13
    $region12: #{tpu_custom_call.1} parent=1 // pred_region
      %36 = vsyncadd [#allocation4], 0
      %s37 = sshll.u32 [#allocation5], 4
      %s38 = int_to_ptr.vmem [resolvable:$true] %s37
      %s39 = sshll.u32 %s1, 4
      %s40 = int_to_ptr.hbm [resolvable:$true] %s39
      %45 = dma.vmem_to_hbm [thread:$0]  %s38, 256, %s40, [#allocation4], 128, 128, 8
    $region13: #{tpu_custom_call.1} parent=1 // pred_fallthru
      _
    // Predicated region
    $region14: #{tpu_custom_call.1} parent=1 // pred_check
      _
    $region15: #{tpu_custom_call.1} parent=1 // pred_check_branch
      %47 = sbr.rel (0) target = $region17
    $region16: #{tpu_custom_call.1} parent=1 // pred_region
      %49 = dma.done [#allocation4], 256
    $region17: #{tpu_custom_call.1} parent=1 // pred_fallthru
      _
    %50 = vsyncpa [#allocation3], 1
    %51 = vsyncpa [#allocation4], 1

</llo_original>
